<compile_context>
chip_gen: v5e
topology: v5e:2x2
jax: 0.10.0
libtpu: 0.0.40
codegen_flags: <defaults>
</compile_context>

<pallas_src>
import functools

import jax
import jax.numpy as jnp
from jax.experimental import pallas as pl
from jax.experimental.pallas import tpu as pltpu

_LANE = 128
_SUB = 8


def _kd_kernel(y_ref, t_ref, out_ref, m_u, z_u, w_u, m_v, z_v, *,
               inv_t, batch, classes, block_b, block_c, mask_rows, mask_lanes):
    """Grid step (bi, ci): one (block_b, block_c) tile of student/teacher logits.

    Online log-sum-exp over the class (ci) axis; per-block KL partial written
    to out_ref at the last ci step.  u = teacher/T, v = student/T (scale fused).
    """
    bi = pl.program_id(0)
    ci = pl.program_id(1)
    n_c = pl.num_programs(1)

    @pl.when(ci == 0)
    def _init():
        m_u[...] = jnp.full(m_u.shape, -jnp.inf, jnp.float32)
        m_v[...] = jnp.full(m_v.shape, -jnp.inf, jnp.float32)
        z_u[...] = jnp.zeros(z_u.shape, jnp.float32)
        z_v[...] = jnp.zeros(z_v.shape, jnp.float32)
        w_u[...] = jnp.zeros(w_u.shape, jnp.float32)

    t32 = t_ref[...].astype(jnp.float32)   # teacher logits ("u" before 1/T)
    y32 = y_ref[...].astype(jnp.float32)   # student logits ("v" before 1/T)

    if mask_lanes:
        # Ragged last class block: neutralize out-of-range lanes (no HBM pad).
        lane = jax.lax.broadcasted_iota(jnp.int32, t32.shape, 1) + ci * block_c
        ok = lane < classes
        neg = jnp.float32(-1e30)            # exp underflows to exactly 0
        t32 = jnp.where(ok, t32, neg)
        y32 = jnp.where(ok, y32, neg)

    # Running row maxima kept in raw logit units; 1/T is fused into exp args.
    mu_new = jnp.maximum(m_u[...], jnp.max(t32, axis=1, keepdims=True))
    mv_new = jnp.maximum(m_v[...], jnp.max(y32, axis=1, keepdims=True))
    a_u = jnp.exp((m_u[...] - mu_new) * inv_t)   # rescale factors (0 at ci==0)
    a_v = jnp.exp((m_v[...] - mv_new) * inv_t)

    e_u = jnp.exp((t32 - mu_new) * inv_t)        # un-normalized teacher probs
    e_v = jnp.exp((y32 - mv_new) * inv_t)        # un-normalized student probs
    d = (t32 - y32) * inv_t                      # (u - v) per element

    z_u[...] = a_u * z_u[...] + jnp.sum(e_u, axis=1, keepdims=True)
    z_v[...] = a_v * z_v[...] + jnp.sum(e_v, axis=1, keepdims=True)
    w_u[...] = a_u * w_u[...] + jnp.sum(e_u * d, axis=1, keepdims=True)
    m_u[...] = mu_new
    m_v[...] = mv_new

    @pl.when(ci == n_c - 1)
    def _finalize():
        # row_kl = E_q[u - v] + LSE(v) - LSE(u)   (no materialized p tensor)
        row_kl = (w_u[...] / z_u[...]
                  + (m_v[...] - m_u[...]) * inv_t
                  + jnp.log(z_v[...]) - jnp.log(z_u[...]))
        if mask_rows:
            # Row-remainder block: zero contributions from rows past the batch.
            row = jax.lax.broadcasted_iota(jnp.int32, row_kl.shape, 0) + bi * block_b
            row_kl = jnp.where(row < batch, row_kl, 0.0)
        block_sum = jnp.sum(row_kl, axis=0, keepdims=True)          # (1, 1)
        out_ref[...] = jnp.broadcast_to(block_sum[None], out_ref.shape)


def basic_kd(y, teacher_scores, temperature=4.0, tile_bytes=2 * 1024 * 1024):
    """Pallas implementation of BasicKD.forward. Returns a scalar f32 loss."""
    assert y.shape == teacher_scores.shape and y.ndim == 2
    B, C = y.shape
    itemsize = jnp.dtype(y.dtype).itemsize

    # ---- class-axis tiling: single full-C block unless it forces < 64 rows/tile.
    if C <= _LANE or C * 64 * itemsize <= tile_bytes:
        cb, n_c = C, 1
    else:
        cb = max(_LANE, (tile_bytes // (64 * itemsize)) // _LANE * _LANE)
        n_c = pl.cdiv(C, cb)
    mask_lanes = (n_c > 1) and (C % cb != 0)

    # ---- batch-axis tiling: budget-sized, but keep >= 4 blocks when B allows
    # (pipeline overlap + v7x megacore), and cap rows to bound scratch size.
    row_bytes = cb * itemsize
    bb_budget = max(_SUB, (tile_bytes // row_bytes) // _SUB * _SUB)
    bb_cap = max(_SUB, ((pl.cdiv(B, 4) + _SUB - 1) // _SUB) * _SUB)
    bb = min(bb_budget, bb_cap, 1024)
    n_b = pl.cdiv(B, bb)
    mask_rows = (n_b * bb != B)

    kernel = functools.partial(
        _kd_kernel, inv_t=float(1.0 / temperature), batch=B, classes=C,
        block_b=bb, block_c=cb, mask_rows=mask_rows, mask_lanes=mask_lanes)

    partials = pl.pallas_call(
        kernel,
        out_shape=jax.ShapeDtypeStruct((n_b, _SUB, _LANE), jnp.float32),
        grid_spec=pltpu.PrefetchScalarGridSpec(
            num_scalar_prefetch=0,
            grid=(n_b, n_c),
            in_specs=[
                pl.BlockSpec((bb, cb), lambda i, j: (i, j)),
                pl.BlockSpec((bb, cb), lambda i, j: (i, j)),
            ],
            out_specs=pl.BlockSpec((1, _SUB, _LANE), lambda i, j: (i, 0, 0)),
            scratch_shapes=[
                pltpu.VMEM((bb, 1), jnp.float32),   # m_u (teacher running max)
                pltpu.VMEM((bb, 1), jnp.float32),   # z_u (teacher running Z)
                pltpu.VMEM((bb, 1), jnp.float32),   # w_u (running sum e_u*(u-v))
                pltpu.VMEM((bb, 1), jnp.float32),   # m_v (student running max)
                pltpu.VMEM((bb, 1), jnp.float32),   # z_v (student running Z)
            ]),
        compiler_params=pltpu.CompilerParams(
            dimension_semantics=("parallel", "arbitrary"),
            vmem_limit_bytes=48 * 1024 * 1024,
        ),
    )(y, teacher_scores)

    t = jnp.float32(temperature)
    return jnp.sum(partials[:, 0, 0]) * (t * t / jnp.float32(B))


def _reference_kd(y, teacher_scores, temperature=4.0):
    """Pure-JAX reference matching F.kl_div(..., reduction='batchmean') * T^2."""
    T = temperature
    p = jax.nn.log_softmax(y.astype(jnp.float32) / T, axis=1)
    q = jax.nn.softmax(teacher_scores.astype(jnp.float32) / T, axis=1)
    log_q = jax.nn.log_softmax(teacher_scores.astype(jnp.float32) / T, axis=1)
    kl = jnp.sum(q * (log_q - p)) / y.shape[0]
    return kl * T * T


if __name__ == "__main__":
    key = jax.random.PRNGKey(0)
    k1, k2, k3, k4 = jax.random.split(key, 4)

    # Case 1: small aligned shapes (the module's typical classification sizes).
    B, C = 16, 32
    y = jax.random.normal(k1, (B, C), dtype=jnp.float32) * 3.0
    teacher = jax.random.normal(k2, (B, C), dtype=jnp.float32) * 3.0
    loss = jax.block_until_ready(basic_kd(y, teacher, temperature=4.0))
    ref = jax.block_until_ready(_reference_kd(y, teacher, temperature=4.0))
    assert jnp.allclose(loss, ref, rtol=1e-4, atol=1e-5), (loss, ref)

    # Case 2: ragged batch -> in-kernel row-mask path (no padding copies).
    B2, C2 = 13, 32
    y2 = jax.random.normal(k3, (B2, C2), dtype=jnp.float32) * 2.0
    t2 = jax.random.normal(k4, (B2, C2), dtype=jnp.float32) * 2.0
    loss2 = jax.block_until_ready(basic_kd(y2, t2, temperature=2.0))
    ref2 = jax.block_until_ready(_reference_kd(y2, t2, temperature=2.0))
    assert jnp.allclose(loss2, ref2, rtol=1e-4, atol=1e-5), (loss2, ref2)

    # Case 3: force the split-class-axis (online LSE + lane-mask) path with a
    # tiny tile budget, emulating vocab-scale behaviour at small cost.
    B3, C3 = 32, 384
    y3 = jax.random.normal(k1, (B3, C3), dtype=jnp.float32)
    t3 = jax.random.normal(k2, (B3, C3), dtype=jnp.float32)
    loss3 = jax.block_until_ready(basic_kd(y3, t3, temperature=4.0,
                                           tile_bytes=64 * 1024))
    ref3 = jax.block_until_ready(_reference_kd(y3, t3, temperature=4.0))
    assert jnp.allclose(loss3, ref3, rtol=1e-4, atol=1e-5), (loss3, ref3)

    print("KERNEL_OK")
</pallas_src>

<mosaic_0001>
module attributes {stable_mosaic.version = 11 : i64} {
  func.func @_kd_kernel(%arg0: i32, %arg1: i32, %arg2: memref<8x32xf32, #tpu.memory_space<vmem>>, %arg3: memref<8x32xf32, #tpu.memory_space<vmem>>, %arg4: memref<1x8x128xf32, #tpu.memory_space<vmem>>, %arg5: memref<8x1xf32, #tpu.memory_space<vmem>>, %arg6: memref<8x1xf32, #tpu.memory_space<vmem>>, %arg7: memref<8x1xf32, #tpu.memory_space<vmem>>, %arg8: memref<8x1xf32, #tpu.memory_space<vmem>>, %arg9: memref<8x1xf32, #tpu.memory_space<vmem>>) attributes {dimension_semantics = [#tpu.dimension_semantics<parallel>, #tpu.dimension_semantics<arbitrary>], iteration_bounds = array<i64: 2, 1>, scalar_prefetch = 0 : i64, scratch_operands = 5 : i64, tpu.core_type = #tpu.core_type<tc>, window_params = [{transform_indices = @transform_0, window_bounds = array<i64: 8, 32>}, {transform_indices = @transform_1, window_bounds = array<i64: 8, 32>}, {transform_indices = @transform_2, window_bounds = array<i64: 1, 8, 128>}]} {
    %c0_i32 = arith.constant 0 : i32
    %0 = arith.cmpi eq, %arg1, %c0_i32 : i32
    %1 = arith.extui %0 : i1 to i32
    %c0_i32_0 = arith.constant 0 : i32
    %2 = arith.cmpi ne, %1, %c0_i32_0 : i32
    scf.if %2 {
      %cst_39 = arith.constant 0xFF800000 : f32
      %60 = vector.broadcast %cst_39 : f32 to vector<8x1xf32>
      %c0_40 = arith.constant 0 : index
      %c0_41 = arith.constant 0 : index
      %61 = vector.load %arg5[%c0_40, %c0_41] : memref<8x1xf32, #tpu.memory_space<vmem>>, vector<8x1xf32>
      tpu.vector_store %arg5[%c0_40, %c0_41], %60 {strides = array<i32>} : memref<8x1xf32, #tpu.memory_space<vmem>>, vector<8x1xf32>,
      %cst_42 = arith.constant 0xFF800000 : f32
      %62 = vector.broadcast %cst_42 : f32 to vector<8x1xf32>
      %c0_43 = arith.constant 0 : index
      %c0_44 = arith.constant 0 : index
      %63 = vector.load %arg8[%c0_43, %c0_44] : memref<8x1xf32, #tpu.memory_space<vmem>>, vector<8x1xf32>
      tpu.vector_store %arg8[%c0_43, %c0_44], %62 {strides = array<i32>} : memref<8x1xf32, #tpu.memory_space<vmem>>, vector<8x1xf32>,
      %cst_45 = arith.constant 0.000000e+00 : f32
      %64 = vector.broadcast %cst_45 : f32 to vector<8x1xf32>
      %c0_46 = arith.constant 0 : index
      %c0_47 = arith.constant 0 : index
      %65 = vector.load %arg6[%c0_46, %c0_47] : memref<8x1xf32, #tpu.memory_space<vmem>>, vector<8x1xf32>
      tpu.vector_store %arg6[%c0_46, %c0_47], %64 {strides = array<i32>} : memref<8x1xf32, #tpu.memory_space<vmem>>, vector<8x1xf32>,
      %cst_48 = arith.constant 0.000000e+00 : f32
      %66 = vector.broadcast %cst_48 : f32 to vector<8x1xf32>
      %c0_49 = arith.constant 0 : index
      %c0_50 = arith.constant 0 : index
      %67 = vector.load %arg9[%c0_49, %c0_50] : memref<8x1xf32, #tpu.memory_space<vmem>>, vector<8x1xf32>
      tpu.vector_store %arg9[%c0_49, %c0_50], %66 {strides = array<i32>} : memref<8x1xf32, #tpu.memory_space<vmem>>, vector<8x1xf32>,
      %cst_51 = arith.constant 0.000000e+00 : f32
      %68 = vector.broadcast %cst_51 : f32 to vector<8x1xf32>
      %c0_52 = arith.constant 0 : index
      %c0_53 = arith.constant 0 : index
      %69 = vector.load %arg7[%c0_52, %c0_53] : memref<8x1xf32, #tpu.memory_space<vmem>>, vector<8x1xf32>
      tpu.vector_store %arg7[%c0_52, %c0_53], %68 {strides = array<i32>} : memref<8x1xf32, #tpu.memory_space<vmem>>, vector<8x1xf32>,
    } else {
    }
    %c0 = arith.constant 0 : index
    %c0_1 = arith.constant 0 : index
    %3 = vector.load %arg3[%c0, %c0_1] : memref<8x32xf32, #tpu.memory_space<vmem>>, vector<8x32xf32>
    %c0_2 = arith.constant 0 : index
    %c0_3 = arith.constant 0 : index
    %4 = vector.load %arg2[%c0_2, %c0_3] : memref<8x32xf32, #tpu.memory_space<vmem>>, vector<8x32xf32>
    %c0_4 = arith.constant 0 : index
    %c0_5 = arith.constant 0 : index
    %5 = vector.load %arg5[%c0_4, %c0_5] : memref<8x1xf32, #tpu.memory_space<vmem>>, vector<8x1xf32>
    %cst = arith.constant dense<0xFF800000> : vector<8xf32>
    %6 = vector.multi_reduction <maximumf>, %3, %cst [1] : vector<8x32xf32> to vector<8xf32>
    %7 = vector.shape_cast %6 : vector<8xf32> to vector<8x1xf32>
    %8 = arith.maximumf %5, %7 : vector<8x1xf32>
    %c0_6 = arith.constant 0 : index
    %c0_7 = arith.constant 0 : index
    %9 = vector.load %arg8[%c0_6, %c0_7] : memref<8x1xf32, #tpu.memory_space<vmem>>, vector<8x1xf32>
    %cst_8 = arith.constant dense<0xFF800000> : vector<8xf32>
    %10 = vector.multi_reduction <maximumf>, %4, %cst_8 [1] : vector<8x32xf32> to vector<8xf32>
    %11 = vector.shape_cast %10 : vector<8xf32> to vector<8x1xf32>
    %12 = arith.maximumf %9, %11 : vector<8x1xf32>
    %c0_9 = arith.constant 0 : index
    %c0_10 = arith.constant 0 : index
    %13 = vector.load %arg5[%c0_9, %c0_10] : memref<8x1xf32, #tpu.memory_space<vmem>>, vector<8x1xf32>
    %14 = arith.subf %13, %8 : vector<8x1xf32>
    %cst_11 = arith.constant 2.500000e-01 : f32
    %15 = vector.broadcast %cst_11 : f32 to vector<8x1xf32>
    %16 = arith.mulf %14, %15 : vector<8x1xf32>
    %17 = math.exp %16 : vector<8x1xf32>
    %c0_12 = arith.constant 0 : index
    %c0_13 = arith.constant 0 : index
    %18 = vector.load %arg8[%c0_12, %c0_13] : memref<8x1xf32, #tpu.memory_space<vmem>>, vector<8x1xf32>
    %19 = arith.subf %18, %12 : vector<8x1xf32>
    %cst_14 = arith.constant 2.500000e-01 : f32
    %20 = vector.broadcast %cst_14 : f32 to vector<8x1xf32>
    %21 = arith.mulf %19, %20 : vector<8x1xf32>
    %22 = math.exp %21 : vector<8x1xf32>
    %23 = vector.broadcast %8 : vector<8x1xf32> to vector<8x32xf32>
    %24 = arith.subf %3, %23 : vector<8x32xf32>
    %cst_15 = arith.constant 2.500000e-01 : f32
    %25 = vector.broadcast %cst_15 : f32 to vector<8x32xf32>
    %26 = arith.mulf %24, %25 : vector<8x32xf32>
    %27 = math.exp %26 : vector<8x32xf32>
    %28 = vector.broadcast %12 : vector<8x1xf32> to vector<8x32xf32>
    %29 = arith.subf %4, %28 : vector<8x32xf32>
    %cst_16 = arith.constant 2.500000e-01 : f32
    %30 = vector.broadcast %cst_16 : f32 to vector<8x32xf32>
    %31 = arith.mulf %29, %30 : vector<8x32xf32>
    %32 = math.exp %31 : vector<8x32xf32>
    %33 = arith.subf %3, %4 : vector<8x32xf32>
    %cst_17 = arith.constant 2.500000e-01 : f32
    %34 = vector.broadcast %cst_17 : f32 to vector<8x32xf32>
    %35 = arith.mulf %33, %34 : vector<8x32xf32>
    %c0_18 = arith.constant 0 : index
    %c0_19 = arith.constant 0 : index
    %36 = vector.load %arg6[%c0_18, %c0_19] : memref<8x1xf32, #tpu.memory_space<vmem>>, vector<8x1xf32>
    %37 = arith.mulf %17, %36 : vector<8x1xf32>
    %cst_20 = arith.constant dense<0.000000e+00> : vector<8xf32>
    %38 = vector.multi_reduction <add>, %27, %cst_20 [1] : vector<8x32xf32> to vector<8xf32>
    %39 = vector.shape_cast %38 : vector<8xf32> to vector<8x1xf32>
    %40 = arith.addf %37, %39 : vector<8x1xf32>
    %c0_21 = arith.constant 0 : index
    %c0_22 = arith.constant 0 : index
    %41 = vector.load %arg6[%c0_21, %c0_22] : memref<8x1xf32, #tpu.memory_space<vmem>>, vector<8x1xf32>
    tpu.vector_store %arg6[%c0_21, %c0_22], %40 {strides = array<i32>} : memref<8x1xf32, #tpu.memory_space<vmem>>, vector<8x1xf32>,
    %c0_23 = arith.constant 0 : index
    %c0_24 = arith.constant 0 : index
    %42 = vector.load %arg9[%c0_23, %c0_24] : memref<8x1xf32, #tpu.memory_space<vmem>>, vector<8x1xf32>
    %43 = arith.mulf %22, %42 : vector<8x1xf32>
    %cst_25 = arith.constant dense<0.000000e+00> : vector<8xf32>
    %44 = vector.multi_reduction <add>, %32, %cst_25 [1] : vector<8x32xf32> to vector<8xf32>
    %45 = vector.shape_cast %44 : vector<8xf32> to vector<8x1xf32>
    %46 = arith.addf %43, %45 : vector<8x1xf32>
    %c0_26 = arith.constant 0 : index
    %c0_27 = arith.constant 0 : index
    %47 = vector.load %arg9[%c0_26, %c0_27] : memref<8x1xf32, #tpu.memory_space<vmem>>, vector<8x1xf32>
    tpu.vector_store %arg9[%c0_26, %c0_27], %46 {strides = array<i32>} : memref<8x1xf32, #tpu.memory_space<vmem>>, vector<8x1xf32>,
    %c0_28 = arith.constant 0 : index
    %c0_29 = arith.constant 0 : index
    %48 = vector.load %arg7[%c0_28, %c0_29] : memref<8x1xf32, #tpu.memory_space<vmem>>, vector<8x1xf32>
    %49 = arith.mulf %17, %48 : vector<8x1xf32>
    %50 = arith.mulf %27, %35 : vector<8x32xf32>
    %cst_30 = arith.constant dense<0.000000e+00> : vector<8xf32>
    %51 = vector.multi_reduction <add>, %50, %cst_30 [1] : vector<8x32xf32> to vector<8xf32>
    %52 = vector.shape_cast %51 : vector<8xf32> to vector<8x1xf32>
    %53 = arith.addf %49, %52 : vector<8x1xf32>
    %c0_31 = arith.constant 0 : index
    %c0_32 = arith.constant 0 : index
    %54 = vector.load %arg7[%c0_31, %c0_32] : memref<8x1xf32, #tpu.memory_space<vmem>>, vector<8x1xf32>
    tpu.vector_store %arg7[%c0_31, %c0_32], %53 {strides = array<i32>} : memref<8x1xf32, #tpu.memory_space<vmem>>, vector<8x1xf32>,
    %c0_33 = arith.constant 0 : index
    %c0_34 = arith.constant 0 : index
    %55 = vector.load %arg5[%c0_33, %c0_34] : memref<8x1xf32, #tpu.memory_space<vmem>>, vector<8x1xf32>
    tpu.vector_store %arg5[%c0_33, %c0_34], %8 {strides = array<i32>} : memref<8x1xf32, #tpu.memory_space<vmem>>, vector<8x1xf32>,
    %c0_35 = arith.constant 0 : index
    %c0_36 = arith.constant 0 : index
    %56 = vector.load %arg8[%c0_35, %c0_36] : memref<8x1xf32, #tpu.memory_space<vmem>>, vector<8x1xf32>
    tpu.vector_store %arg8[%c0_35, %c0_36], %12 {strides = array<i32>} : memref<8x1xf32, #tpu.memory_space<vmem>>, vector<8x1xf32>,
    %c0_i32_37 = arith.constant 0 : i32
    %57 = arith.cmpi eq, %arg1, %c0_i32_37 : i32
    %58 = arith.extui %57 : i1 to i32
    %c0_i32_38 = arith.constant 0 : i32
    %59 = arith.cmpi ne, %58, %c0_i32_38 : i32
    scf.if %59 {
      %c0_39 = arith.constant 0 : index
      %c0_40 = arith.constant 0 : index
      %60 = vector.load %arg7[%c0_39, %c0_40] : memref<8x1xf32, #tpu.memory_space<vmem>>, vector<8x1xf32>
      %c0_41 = arith.constant 0 : index
      %c0_42 = arith.constant 0 : index
      %61 = vector.load %arg6[%c0_41, %c0_42] : memref<8x1xf32, #tpu.memory_space<vmem>>, vector<8x1xf32>
      %62 = arith.divf %60, %61 : vector<8x1xf32>
      %c0_43 = arith.constant 0 : index
      %c0_44 = arith.constant 0 : index
      %63 = vector.load %arg8[%c0_43, %c0_44] : memref<8x1xf32, #tpu.memory_space<vmem>>, vector<8x1xf32>
      %c0_45 = arith.constant 0 : index
      %c0_46 = arith.constant 0 : index
      %64 = vector.load %arg5[%c0_45, %c0_46] : memref<8x1xf32, #tpu.memory_space<vmem>>, vector<8x1xf32>
      %65 = arith.subf %63, %64 : vector<8x1xf32>
      %cst_47 = arith.constant 2.500000e-01 : f32
      %66 = vector.broadcast %cst_47 : f32 to vector<8x1xf32>
      %67 = arith.mulf %65, %66 : vector<8x1xf32>
      %68 = arith.addf %62, %67 : vector<8x1xf32>
      %c0_48 = arith.constant 0 : index
      %c0_49 = arith.constant 0 : index
      %69 = vector.load %arg9[%c0_48, %c0_49] : memref<8x1xf32, #tpu.memory_space<vmem>>, vector<8x1xf32>
      %70 = math.log %69 : vector<8x1xf32>
      %71 = arith.addf %68, %70 : vector<8x1xf32>
      %c0_50 = arith.constant 0 : index
      %c0_51 = arith.constant 0 : index
      %72 = vector.load %arg6[%c0_50, %c0_51] : memref<8x1xf32, #tpu.memory_space<vmem>>, vector<8x1xf32>
      %73 = math.log %72 : vector<8x1xf32>
      %74 = arith.subf %71, %73 : vector<8x1xf32>
      %cst_52 = arith.constant dense<0.000000e+00> : vector<1xf32>
      %75 = vector.multi_reduction <add>, %74, %cst_52 [0] : vector<8x1xf32> to vector<1xf32>
      %76 = vector.shape_cast %75 : vector<1xf32> to vector<1x1xf32>
      %77 = vector.shape_cast %76 : vector<1x1xf32> to vector<1x1x1xf32>
      %78 = vector.shape_cast %77 : vector<1x1x1xf32> to vector<1x1x1xf32>
      %79 = vector.broadcast %78 : vector<1x1x1xf32> to vector<1x8x128xf32>
      %c0_53 = arith.constant 0 : index
      %c0_54 = arith.constant 0 : index
      %c0_55 = arith.constant 0 : index
      %80 = vector.load %arg4[%c0_53, %c0_54, %c0_55] : memref<1x8x128xf32, #tpu.memory_space<vmem>>, vector<1x8x128xf32>
      tpu.vector_store %arg4[%c0_53, %c0_54, %c0_55], %79 {strides = array<i32>} : memref<1x8x128xf32, #tpu.memory_space<vmem>>, vector<1x8x128xf32>,
    } else {
    }
    return
  }
  func.func @transform_0(%arg0: i32, %arg1: i32) -> (i32, i32) {
    %c0_i32 = arith.constant 0 : i32
    return %arg0, %arg1 : i32, i32
  }
  func.func @transform_1(%arg0: i32, %arg1: i32) -> (i32, i32) {
    %c0_i32 = arith.constant 0 : i32
    return %arg0, %arg1 : i32, i32
  }
  func.func @transform_2(%arg0: i32, %arg1: i32) -> (i32, i32, i32) {
    %c0_i32 = arith.constant 0 : i32
    %c0_i32_0 = arith.constant 0 : i32
    %c0_i32_1 = arith.constant 0 : i32
    return %arg0, %c0_i32, %c0_i32_0 : i32, i32, i32
  }
}

</mosaic_0001>

<llo_original>
// kernel: tpu_custom_call.1
$region0: #{tpu_custom_call.1}
  #allocation0 [shape = 'u32[]', space=smem, size = 0x4, offset = 0x4, fixed_abs, tag = 'smem constant byte address 0x4 - core index']
  #allocation1 [shape = 'u32[72,128]{1,0:T(1,128)}', space=vmem, size = 0x9000, scoped, tag = 'internal scratch']
  #allocation2 [shape = 'f32[8,1]{1,0:T(8,128)}', space=vmem, size = 0x1000, scoped, tag = 'scratch operand']
  #allocation3 [shape = 'f32[8,1]{1,0:T(8,128)}', space=vmem, size = 0x1000, scoped, tag = 'scratch operand']
  #allocation4 [shape = 'f32[8,1]{1,0:T(8,128)}', space=vmem, size = 0x1000, scoped, tag = 'scratch operand']
  #allocation5 [shape = 'f32[8,1]{1,0:T(8,128)}', space=vmem, size = 0x1000, scoped, tag = 'scratch operand']
  #allocation6 [shape = 'f32[8,1]{1,0:T(8,128)}', space=vmem, size = 0x1000, scoped, tag = 'scratch operand']
  %s0 = inlined_call_operand.hbm [shape: f32[16,32], index: 0, kind: input, shape index: {}]
  %s1 = inlined_call_operand.hbm [shape: f32[16,32], index: 1, kind: input, shape index: {}]
  %s2 = inlined_call_operand.hbm [shape: f32[2,8,128], index: 2, kind: output, shape index: {}]
  %s3 = sld [smem:[#allocation0]]
  $region57: #{tpu_custom_call.1} parent=0
    _
  %s5 = ssub.s32 1, %s3
  %s6 = scalar_select 0, %s5, %s3
  $region1: #{tpu_custom_call.1} parent=0
    #allocation7 [shape = 'u8[8192]{0}', space=vmem, size = 0x2000, scoped, tag = 'input window, operand 0']
    #allocation8 [shape = 's32[2]{0}', space=sflag, size = 0x8, scoped, tag = 'scoped memory for tpu_custom_call.1']
    #allocation9 [shape = 's32[2]{0}', space=sflag, size = 0x8, scoped, tag = 'scoped memory for tpu_custom_call.1']
    #allocation10 [shape = 'u8[8192]{0}', space=vmem, size = 0x2000, scoped, tag = 'input window, operand 1']
    #allocation11 [shape = 's32[2]{0}', space=sflag, size = 0x8, scoped, tag = 'scoped memory for tpu_custom_call.1']
    #allocation12 [shape = 'u8[8192]{0}', space=vmem, size = 0x2000, scoped, tag = 'output window, operand 0']
    %7 = vsyncpa [#allocation8], 0
    %s8 = scalar_lea.sflag [#allocation8], 1
    %9 = vsyncpa %s8, 0
    %10 = vsyncpa [#allocation11], 0
    %s11 = scalar_lea.sflag [#allocation11], 1
    %12 = vsyncpa %s11, 0
    %13 = vsyncpa [#allocation9], 0
    %s14 = scalar_lea.sflag [#allocation9], 1
    %15 = vsyncpa %s14, 0
    loop: start=0, step=1, limit=4
    $region2: #{tpu_custom_call.1} parent=1 // loop_pre_header
      _
    $region3: #{tpu_custom_call.1} parent=1 // loop_header
      %s17 = sphi 0, %s21
      %p18 = scmp.ge.s32.totalorder %s17, 4
      %s24 = sphi 0, %s36
      %s25 = sphi 0, %s32
      %s26 = sphi 0, %s24
      %s27 = sphi 0, %s25
      %s28 = sphi 0, %s26
      %s29 = sphi 0, %s27
      %s41 = sphi 0, %s43
      %s44 = sphi 0, %s41
      %s45 = sphi 0, %s44
      %s61 = sphi 0, %s45
      %s69 = sphi 0, %s71
      %s72 = sphi 0, %s69
      %s73 = sphi 0, %s72
      %s89 = sphi 0, %s73
      %s95 = sphi 0, %s97
      %s98 = sphi 0, %s95
      %s99 = sphi 0, %s98
      %s115 = sphi 0, %s99
    $region4: #{tpu_custom_call.1} parent=1 // loop_header_branch
      %20 = sbr.rel (%p18) target = $region8
    $region5: #{tpu_custom_call.1} parent=1 // loop_body
      %s22 = ssub.s32 %s17, 1
      %s23 = ssub.s32 %s17, 2
      %s30 = sadd.s32 1, %s25
      %p31 = scmp.ge.s32.totalorder %s30, 1
      %s32 = scalar_select %p31, 0, %s30
      %s33 = sadd.s32 1, %s24
      %s34 = scalar_select %p31, %s33, %s24
      %p35 = scmp.ge.s32.totalorder %s34, 2
      %s36 = scalar_select %p35, 0, %s34
      %s37 = ssub.s32 %s24, %s36
      %s38 = ssub.s32 %s25, %s32
      %s39 = sor.u32 %s37, %s38
      %p40 = scmp.eq.s32.totalorder %s39, 0
      %s42 = sadd.s32 %s41, 1
      %s43 = scalar_select %p40, %s41, %s42
      %p46 = pneg %p40
      %p47 = scmp.eq.s32.totalorder %s17, 1
      %p48 = por %p46, %p47
      %p49 = scmp.ne.s32.totalorder %s41, %s44
      %p50 = scmp.eq.s32.totalorder %s17, 0
      %p51 = por %p49, %p50
      %p52 = scmp.ne.s32.totalorder %s41, %s44
      %p53 = scmp.eq.s32.totalorder %s22, 1
      %p54 = por %p52, %p53
      %p55 = scmp.ne.s32.totalorder %s44, %s45
      %p56 = scmp.eq.s32.totalorder %s22, 0
      %p57 = por %p55, %p56
      %p58 = scmp.ne.s32.totalorder %s44, %s45
      %p59 = scmp.eq.s32.totalorder %s23, 1
      %p60 = por %p58, %p59
      %p62 = scmp.ne.s32.totalorder %s45, %s61
      %p63 = scmp.eq.s32.totalorder %s23, 0
      %p64 = por %p62, %p63
      %s65 = ssub.s32 %s24, %s36
      %s66 = ssub.s32 %s25, %s32
      %s67 = sor.u32 %s65, %s66
      %p68 = scmp.eq.s32.totalorder %s67, 0
      %s70 = sadd.s32 %s69, 1
      %s71 = scalar_select %p68, %s69, %s70
      %p74 = pneg %p68
      %p75 = scmp.eq.s32.totalorder %s17, 1
      %p76 = por %p74, %p75
      %p77 = scmp.ne.s32.totalorder %s69, %s72
      %p78 = scmp.eq.s32.totalorder %s17, 0
      %p79 = por %p77, %p78
      %p80 = scmp.ne.s32.totalorder %s69, %s72
      %p81 = scmp.eq.s32.totalorder %s22, 1
      %p82 = por %p80, %p81
      %p83 = scmp.ne.s32.totalorder %s72, %s73
      %p84 = scmp.eq.s32.totalorder %s22, 0
      %p85 = por %p83, %p84
      %p86 = scmp.ne.s32.totalorder %s72, %s73
      %p87 = scmp.eq.s32.totalorder %s23, 1
      %p88 = por %p86, %p87
      %p90 = scmp.ne.s32.totalorder %s73, %s89
      %p91 = scmp.eq.s32.totalorder %s23, 0
      %p92 = por %p90, %p91
      %s93 = ssub.s32 %s24, %s36
      %p94 = scmp.eq.s32.totalorder %s93, 0
      %s96 = sadd.s32 %s95, 1
      %s97 = scalar_select %p94, %s95, %s96
      %p100 = pneg %p94
      %p101 = scmp.eq.s32.totalorder %s17, 1
      %p102 = por %p100, %p101
      %p103 = scmp.ne.s32.totalorder %s95, %s98
      %p104 = scmp.eq.s32.totalorder %s17, 0
      %p105 = por %p103, %p104
      %p106 = scmp.ne.s32.totalorder %s95, %s98
      %p107 = scmp.eq.s32.totalorder %s22, 1
      %p108 = por %p106, %p107
      %p109 = scmp.ne.s32.totalorder %s98, %s99
      %p110 = scmp.eq.s32.totalorder %s22, 0
      %p111 = por %p109, %p110
      %p112 = scmp.ne.s32.totalorder %s98, %s99
      %p113 = scmp.eq.s32.totalorder %s23, 1
      %p114 = por %p112, %p113
      %p116 = scmp.ne.s32.totalorder %s99, %s115
      %p117 = scmp.eq.s32.totalorder %s23, 0
      %p118 = por %p116, %p117
      %p119 = scmp.le.s32.totalorder 1, %s17
      %p120 = scmp.lt.s32.totalorder %s17, 3
      %p121 = pnand %p119, %p120
      %p122 = pneg %p121
      // Predicated region
      $region9: #{tpu_custom_call.1} parent=5 // pred_check
        _
      $region10: #{tpu_custom_call.1} parent=5 // pred_check_branch
        %124 = sbr.rel (%p121) target = $region12
      $region11: #{tpu_custom_call.1} parent=5 // pred_region
        %s125 = ssub.s32 %s17, 1
      $region12: #{tpu_custom_call.1} parent=5 // pred_fallthru
        _
      %p126 = scmp.lt.s32.totalorder %s17, 2
      // Predicated region
      $region13: #{tpu_custom_call.1} parent=5 // pred_check
        %p127 = pneg %p126
      $region14: #{tpu_custom_call.1} parent=5 // pred_check_branch
        %129 = sbr.rel (%p127) target = $region16
      $region15: #{tpu_custom_call.1} parent=5 // pred_region
        // Predicated region
        $region17: #{tpu_custom_call.1} parent=15 // pred_check
          %p130 = pneg %p51
        $region18: #{tpu_custom_call.1} parent=15 // pred_check_branch
          %132 = sbr.rel (%p130) target = $region20
        $region19: #{tpu_custom_call.1} parent=15 // pred_region
          %s133 = sand.u32 %s41, 1
          %s134 = scalar_lea.sflag [#allocation8], %s133
          %s135 = sand.u32 %s41, 1
          %s136 = smul.addr %s135, 8
          %s137 = scalar_lea.vmem [#allocation7], %s136
          %139 = vsyncadd %s134, 0
          %s140 = sadd.s32 %s25, %s24
          %s141 = smul.addr %s140, 8
          %s142 = scalar_lea.hbm %s0, %s141
          %s144 = sshll.u32 %s142, 4
          %s145 = int_to_ptr.hbm [resolvable:$true] %s144
          %s146 = sshll.u32 %s137, 4
          %s147 = int_to_ptr.vmem [resolvable:$true] %s146
          %149 = dma.hbm_to_vmem [thread:$0]  %s145, 128, %s147, %s134
        $region20: #{tpu_custom_call.1} parent=15 // pred_fallthru
          _
        // Predicated region
        $region21: #{tpu_custom_call.1} parent=15 // pred_check
          %p150 = pneg %p79
        $region22: #{tpu_custom_call.1} parent=15 // pred_check_branch
          %152 = sbr.rel (%p150) target = $region24
        $region23: #{tpu_custom_call.1} parent=15 // pred_region
          %s153 = sand.u32 %s69, 1
          %s154 = scalar_lea.sflag [#allocation11], %s153
          %s155 = sand.u32 %s69, 1
          %s156 = smul.addr %s155, 8
          %s157 = scalar_lea.vmem [#allocation10], %s156
          %159 = vsyncadd %s154, 0
          %s160 = sadd.s32 %s25, %s24
          %s161 = smul.addr %s160, 8
          %s162 = scalar_lea.hbm %s1, %s161
          %s164 = sshll.u32 %s162, 4
          %s165 = int_to_ptr.hbm [resolvable:$true] %s164
          %s166 = sshll.u32 %s157, 4
          %s167 = int_to_ptr.vmem [resolvable:$true] %s166
          %169 = dma.hbm_to_vmem [thread:$0]  %s165, 128, %s167, %s154
        $region24: #{tpu_custom_call.1} parent=15 // pred_fallthru
          _
      $region16: #{tpu_custom_call.1} parent=5 // pred_fallthru
        _
      %p170 = scmp.le.s32.totalorder 1, %s17
      %p171 = scmp.lt.s32.totalorder %s17, 3
      %p172 = pnand %p170, %p171
      %p173 = pneg %p172
      // Predicated region
      $region25: #{tpu_custom_call.1} parent=5 // pred_check
        _
      $region26: #{tpu_custom_call.1} parent=5 // pred_check_branch
        %175 = sbr.rel (%p172) target = $region28
      $region27: #{tpu_custom_call.1} parent=5 // pred_region
        %s176 = ssub.s32 %s17, 1
        %s177 = sand.u32 %s44, 1
        %s178 = scalar_lea.sflag [#allocation8], %s177
        %s179 = sand.u32 %s44, 1
        %s180 = smul.addr %s179, 8
        %s181 = scalar_lea.vmem [#allocation7], %s180
        // Predicated region
        $region29: #{tpu_custom_call.1} parent=27 // pred_check
          %p182 = pneg %p57
        $region30: #{tpu_custom_call.1} parent=27 // pred_check_branch
          %184 = sbr.rel (%p182) target = $region32
        $region31: #{tpu_custom_call.1} parent=27 // pred_region
          %186 = dma.done %s178, 128
        $region32: #{tpu_custom_call.1} parent=27 // pred_fallthru
          _
        %s187 = sand.u32 %s72, 1
        %s188 = scalar_lea.sflag [#allocation11], %s187
        %s189 = sand.u32 %s72, 1
        %s190 = smul.addr %s189, 8
        %s191 = scalar_lea.vmem [#allocation10], %s190
        // Predicated region
        $region33: #{tpu_custom_call.1} parent=27 // pred_check
          %p192 = pneg %p85
        $region34: #{tpu_custom_call.1} parent=27 // pred_check_branch
          %194 = sbr.rel (%p192) target = $region36
        $region35: #{tpu_custom_call.1} parent=27 // pred_region
          %196 = dma.done %s188, 128
        $region36: #{tpu_custom_call.1} parent=27 // pred_fallthru
          _
        %s197 = sand.u32 %s44, 1
        %s198 = scalar_lea.sflag [#allocation8], %s197
        %s199 = sand.u32 %s44, 1
        %s200 = smul.addr %s199, 8
        %s201 = scalar_lea.vmem [#allocation7], %s200
        %p202 = pneg %p57
        %p203 = pneg %p54
        %s204 = sand.u32 %s72, 1
        %s205 = scalar_lea.sflag [#allocation11], %s204
        %s206 = sand.u32 %s72, 1
        %s207 = smul.addr %s206, 8
        %s208 = scalar_lea.vmem [#allocation10], %s207
        %p209 = pneg %p85
        %p210 = pneg %p82
        %p211 = pneg %p111
        %p212 = pneg %p108
        %s213 = sand.u32 %s98, 1
        %s214 = scalar_lea.sflag [#allocation9], %s213
        %s215 = sand.u32 %s98, 1
        %s216 = smul.addr %s215, 8
        %s217 = scalar_lea.vmem [#allocation12], %s216
        %p218 = scmp.eq.s32.totalorder %s27, 0
        // Predicated region
        $region37: #{tpu_custom_call.1} parent=27 // pred_check
          %p219 = pneg %p218
        $region38: #{tpu_custom_call.1} parent=27 // pred_check_branch
          %221 = sbr.rel (%p219) target = $region40
        $region39: #{tpu_custom_call.1} parent=27 // pred_region
          %vm222 = vcmask 7168
          %223 = vst.msk [vmem:[#allocation2] sm:$0xff] %vm222, -inf
          %224 = vst.msk [vmem:[#allocation5] sm:$0xff] %vm222, -inf
          %225 = vst.msk [vmem:[#allocation3] sm:$0xff] %vm222, 0.0
          %226 = vst.msk [vmem:[#allocation6] sm:$0xff] %vm222, 0.0
          %227 = vst.msk [vmem:[#allocation4] sm:$0xff] %vm222, 0.0
        $region40: #{tpu_custom_call.1} parent=27 // pred_fallthru
          _
        %v228 = vld [vmem:[%s191] sm:$0xff]
        %v229 = vld [vmem:[%s181] sm:$0xff]
        %v230 = vld [vmem:[#allocation2] sm:$0xff]
        %vm231 = vcmask 261120
        %v232 = vsel %vm231, %v228, -inf
        %233 = vmax.xlane.f32.xlu0 %v232
        %v234 = vpop.xlane.xlu0 %233
        %v235 = vmax.f32 %v230, %v234
        %v236 = vld [vmem:[#allocation5] sm:$0xff]
        %v237 = vsel %vm231, %v229, -inf
        %238 = vmax.xlane.f32.xlu0 %v237
        %v239 = vpop.xlane.xlu0 %238
        %v240 = vmax.f32 %v236, %v239
        %v241 = vsub.f32 %v230, %v235
        %v242 = vmul.f32 %v241, 0.25
        %v243 = vmul.f32 %v242, 1.442695
        %v244 = vpow.pop %v243
        %v245 = vsub.f32 %v236, %v240
        %v246 = vmul.f32 %v245, 0.25
        %v247 = vmul.f32 %v246, 1.442695
        %v248 = vpow.pop %v247
        %250 = vset.pattern.permute.xlu0 0
        %251 = vperm.xlu0 %250, %v235
        %v252 = vpop.permute.xlu0 %251
        %v254 = vsub.f32 %v228, %v252
        %v255 = vmul.f32 %v254, 0.25
        %v256 = vmul.f32 %v255, 1.442695
        %v257 = vpow.pop %v256
        %259 = vset.pattern.permute.xlu0 0
        %260 = vperm.xlu0 %259, %v240
        %v261 = vpop.permute.xlu0 %260
        %v263 = vsub.f32 %v229, %v261
        %v264 = vmul.f32 %v263, 0.25
        %v265 = vmul.f32 %v264, 1.442695
        %v266 = vpow.pop %v265
        %v267 = vsub.f32 %v228, %v229
        %v268 = vmul.f32 %v267, 0.25
        %v269 = vld [vmem:[#allocation3] sm:$0xff]
        %v270 = vmul.f32 %v244, %v269
        %v271 = vsel %vm231, %v257, 0.0
        %272 = vadd.xlane.f32.xlu0 %v271
        %v273 = vpop.xlane.xlu0 %272
        %v274 = vadd.f32 %v270, %v273
        %vm275 = vcmask 7168
        %276 = vst.msk [vmem:[#allocation3] sm:$0xff] %vm275, %v274
        %v277 = vld [vmem:[#allocation6] sm:$0xff]
        %v278 = vmul.f32 %v248, %v277
        %v279 = vsel %vm231, %v266, 0.0
        %280 = vadd.xlane.f32.xlu0 %v279
        %v281 = vpop.xlane.xlu0 %280
        %v282 = vadd.f32 %v278, %v281
        %283 = vst.msk [vmem:[#allocation6] sm:$0xff] %vm275, %v282
        %v284 = vld [vmem:[#allocation4] sm:$0xff]
        %v285 = vmul.f32 %v244, %v284
        %v286 = vmul.f32 %v257, %v268
        %v287 = vsel %vm231, %v286, 0.0
        %288 = vadd.xlane.f32.xlu0 %v287
        %v289 = vpop.xlane.xlu0 %288
        %v290 = vadd.f32 %v285, %v289
        %291 = vst.msk [vmem:[#allocation4] sm:$0xff] %vm275, %v290
        %292 = vst.msk [vmem:[#allocation2] sm:$0xff] %vm275, %v235
        %293 = vst.msk [vmem:[#allocation5] sm:$0xff] %vm275, %v240
        // Predicated region
        $region41: #{tpu_custom_call.1} parent=27 // pred_check
          %p294 = pneg %p218
        $region42: #{tpu_custom_call.1} parent=27 // pred_check_branch
          %296 = sbr.rel (%p294) target = $region44
        $region43: #{tpu_custom_call.1} parent=27 // pred_region
          %v297 = vld [vmem:[#allocation4] sm:$0xff]
          %v298 = vld [vmem:[#allocation3] sm:$0xff]
          %v299 = vrcp.pop %v298
          %v300 = vmul.f32 %v298, %v299
          %v301 = vsub.f32 1.0, %v300
          %v302 = vmul.f32 %v299, %v301
          %v303 = vadd.f32 %v299, %v302
          %vm304 = vweird.f32 %v298
          %vm305 = vweird.f32 %v299
          %vm306 = vmor %vm304, %vm305
          %v307 = vsel %vm306, %v299, %v303
          %v308 = vand.u32 2147483647, %v298
          %vm309 = vcmp.eq.f32.partialorder %v308, 8.507059e+37
          %v310 = vand.u32 %v298, 2147483648
          %v311 = vor.u32 1.1754944e-38, %v310
          %v312 = vsel %vm309, %v311, %v307
          %v313 = vmul.f32 %v297, %v312
          %v314 = vld [vmem:[#allocation5] sm:$0xff]
          %v315 = vld [vmem:[#allocation2] sm:$0xff]
          %v316 = vsub.f32 %v314, %v315
          %v317 = vmul.f32 %v316, 0.25
          %v318 = vadd.f32 %v313, %v317
          %v319 = vld [vmem:[#allocation6] sm:$0xff]
          %v320 = vlog2.pop %v319
          %v321 = vmul.f32 %v320, 0.6931472
          %v322 = vadd.f32 %v318, %v321
          %v323 = vlog2.pop %v298
          %v324 = vmul.f32 %v323, 0.6931472
          %v325 = vsub.f32 %v322, %v324
          %v326 = vsel %vm275, %v325, 0.0
          %v327 = vrot.slane %v326, 4
          %v328 = vadd.f32 %v326, %v327
          %v329 = vrot.slane %v328, 2
          %v330 = vadd.f32 %v328, %v329
          %v331 = vrot.slane %v330, 1
          %v332 = vadd.f32 %v330, %v331
          %334 = vset.pattern.permute.xlu0 0
          %335 = vperm.xlu0 %334, %v332
          %v336 = vpop.permute.xlu0 %335
          %338 = vst [vmem:[%s217] sm:$0xff] %v336
        $region44: #{tpu_custom_call.1} parent=27 // pred_fallthru
          _
        %s339 = sand.u32 %s98, 1
        %s340 = scalar_lea.sflag [#allocation9], %s339
        %s341 = sand.u32 %s98, 1
        %s342 = smul.addr %s341, 8
        %s343 = scalar_lea.vmem [#allocation12], %s342
        // Predicated region
        $region45: #{tpu_custom_call.1} parent=27 // pred_check
          %p344 = pneg %p108
        $region46: #{tpu_custom_call.1} parent=27 // pred_check_branch
          %346 = sbr.rel (%p344) target = $region48
        $region47: #{tpu_custom_call.1} parent=27 // pred_region
          %348 = vsyncadd %s340, 0
          %s349 = smul.addr %s26, 8
          %s350 = scalar_lea.hbm %s2, %s349
          %s352 = sshll.u32 %s343, 4
          %s353 = int_to_ptr.vmem [resolvable:$true] %s352
          %s354 = sshll.u32 %s350, 4
          %s355 = int_to_ptr.hbm [resolvable:$true] %s354
          %357 = dma.vmem_to_hbm [thread:$0]  %s353, 128, %s355, %s340
        $region48: #{tpu_custom_call.1} parent=27 // pred_fallthru
          _
      $region28: #{tpu_custom_call.1} parent=5 // pred_fallthru
        _
      %p358 = scmp.le.s32.totalorder 2, %s17
      // Predicated region
      $region49: #{tpu_custom_call.1} parent=5 // pred_check
        %p359 = pneg %p358
      $region50: #{tpu_custom_call.1} parent=5 // pred_check_branch
        %361 = sbr.rel (%p359) target = $region52
      $region51: #{tpu_custom_call.1} parent=5 // pred_region
        %s362 = ssub.s32 %s17, 2
        // Predicated region
        $region53: #{tpu_custom_call.1} parent=51 // pred_check
          %p363 = pneg %p114
        $region54: #{tpu_custom_call.1} parent=51 // pred_check_branch
          %365 = sbr.rel (%p363) target = $region56
        $region55: #{tpu_custom_call.1} parent=51 // pred_region
          %s366 = sand.u32 %s99, 1
          %s367 = scalar_lea.sflag [#allocation9], %s366
          %s368 = sand.u32 %s99, 1
          %s369 = smul.addr %s368, 8
          %s370 = scalar_lea.vmem [#allocation12], %s369
          %372 = dma.done %s367, 128
        $region56: #{tpu_custom_call.1} parent=51 // pred_fallthru
          _
      $region52: #{tpu_custom_call.1} parent=5 // pred_fallthru
        _
    $region6: #{tpu_custom_call.1} parent=1 // loop_footer
      %s21 = sadd.s32 1, %s17
    $region7: #{tpu_custom_call.1} parent=1 // loop_footer_branch
      %16 = sbr.rel target = $region3
    $region8: #{tpu_custom_call.1} parent=1 // loop_exit
      _
    %373 = vsyncpa [#allocation8], 1
    %s374 = scalar_lea.sflag [#allocation8], 1
    %375 = vsyncpa %s374, 1
    %376 = vsyncpa [#allocation11], 1
    %s377 = scalar_lea.sflag [#allocation11], 1
    %378 = vsyncpa %s377, 1
    %379 = vsyncpa [#allocation9], 1
    %s380 = scalar_lea.sflag [#allocation9], 1
    %381 = vsyncpa %s380, 1

</llo_original>
